<compile_context>
chip_gen: v6e
topology: v6e:2x2x1
jax: 0.10.0
libtpu: 0.0.40
codegen_flags: <defaults>
</compile_context>

<pallas_src>
import jax
import jax.numpy as jnp
from jax.experimental import pallas as pl
from jax.experimental.pallas import tpu as pltpu

DIM_PE = 4          # dim_pe
H1 = 2 * DIM_PE     # hidden width of linear_A when n_layers > 1
MAX_FREQS = 1       # max_freqs (K)


def _lappe_kernel(x_ref, wA_ref, bA_ref, w2_ref, b2_ref, out_ref):
    # x_ref   : [2, TR, 128] VMEM  (x_ref[0]=EigVecs, x_ref[1]=EigVals; nodes on lanes)
    # wA_ref  : [2, H1]        SMEM (linear_A weight, input-major: x @ wA)
    # bA_ref  : [H1]           SMEM
    # w2_ref  : [H1, DIM_PE]   SMEM
    # b2_ref  : [DIM_PE]       SMEM
    # out_ref : [DIM_PE, TR, 128] VMEM (lane-dense output slab)
    ev = x_ref[0]
    el = x_ref[1]

    vec_nan = jnp.isnan(ev)                       # empty_mask[:, :, 0]
    val_nan = jnp.isnan(el)                       # empty_mask[:, :, 1]
    ev0 = jnp.where(vec_nan, 0.0, ev)
    el0 = jnp.where(val_nan, 0.0, el)

    # Hoist every SMEM scalar into Python locals (read exactly once each).
    wA0 = [wA_ref[0, f] for f in range(H1)]
    wA1 = [wA_ref[1, f] for f in range(H1)]
    bA = [bA_ref[f] for f in range(H1)]
    w2 = [[w2_ref[f, j] for j in range(DIM_PE)] for f in range(H1)]
    b2 = [b2_ref[j] for j in range(DIM_PE)]

    # linear_A + ReLU feeds directly into per-output accumulators of the
    # second Linear (loop nesting chosen so hf never needs to be kept/reloaded).
    acc = [None] * DIM_PE
    for f in range(H1):
        hf = jnp.maximum(ev0 * wA0[f] + el0 * wA1[f] + bA[f], 0.0)
        for j in range(DIM_PE):
            contrib = hf * w2[f][j]
            acc[j] = contrib if acc[j] is None else acc[j] + contrib

    # Bias + ReLU, masked_fill(empty_mask[:, :, 0]); sum over K is trivial (K=1).
    for j in range(DIM_PE):
        oj = jnp.maximum(acc[j] + b2[j], 0.0)
        out_ref[j, :, :] = jnp.where(vec_nan, 0.0, oj)


def lap_pe_node_encoder_feature_major(eig_vals, eig_vecs, params, *, tile_rows=1024):
    """eig_vals: [N, K, 1] f32, eig_vecs: [N, K] f32 -> [DIM_PE, N] f32.

    Feature-major output: no post-kernel transpose/HBM pass.  Consumers that
    concatenate PE with node features can read this layout directly.
    """
    wA, bA, w2, b2 = params
    n, k = eig_vecs.shape
    assert k == MAX_FREQS
    assert eig_vals.shape == (n, k, 1)
    assert tile_rows % 8 == 0

    ev = eig_vecs[:, 0].astype(jnp.float32)
    el = eig_vals[:, 0, 0].astype(jnp.float32)

    # Single relayout: stack the two channels, pad (zeros; padded rows are
    # discarded so the pad value is irrelevant) only if needed, view as
    # [2, R, 128] with nodes on the lane axis.
    n_pad = (-n) % 128
    x = jnp.stack([ev, el], axis=0)                       # [2, N]
    if n_pad:
        x = jnp.pad(x, ((0, 0), (0, n_pad)))
    r = (n + n_pad) // 128
    x2 = x.reshape(2, r, 128)

    # Sublane tile: full array if tiny; otherwise a multiple of 8, capped so
    # the grid has >= 2 steps (keeps both v7x TensorCores busy; harmless on
    # single-TC v5e/v6e).  Partial last block handled by the grid.
    if r <= 8:
        tr = r
    else:
        half = ((-(-r // 2)) + 7) // 8 * 8                # round_up(ceil(r/2), 8)
        tr = min(tile_rows, max(8, half))
    grid = (pl.cdiv(r, tr),)

    out = pl.pallas_call(
        _lappe_kernel,
        out_shape=jax.ShapeDtypeStruct((DIM_PE, r, 128), jnp.float32),
        grid=grid,
        in_specs=[
            pl.BlockSpec((2, tr, 128), lambda i: (0, i, 0)),       # EigVecs+EigVals slab
            pl.BlockSpec(memory_space=pltpu.MemorySpace.SMEM),     # linear_A W
            pl.BlockSpec(memory_space=pltpu.MemorySpace.SMEM),     # linear_A b
            pl.BlockSpec(memory_space=pltpu.MemorySpace.SMEM),     # pe_encoder W
            pl.BlockSpec(memory_space=pltpu.MemorySpace.SMEM),     # pe_encoder b
        ],
        out_specs=pl.BlockSpec((DIM_PE, tr, 128), lambda i: (0, i, 0)),
        compiler_params=pltpu.CompilerParams(
            dimension_semantics=("parallel",)),
    )(x2, wA, bA, w2, b2)

    # [DIM_PE, R, 128] -> [DIM_PE, N]: pure view-ish reshape + column slice.
    return out.reshape(DIM_PE, r * 128)[:, :n]


def lap_pe_node_encoder(eig_vals, eig_vecs, params, *, tile_rows=1024):
    """Module-parity layout: [N, DIM_PE].  The transpose is consumer-side
    plumbing; prefer `lap_pe_node_encoder_feature_major` when the downstream
    op can consume feature-major directly (avoids one HBM pass)."""
    pe = lap_pe_node_encoder_feature_major(
        eig_vals, eig_vecs, params, tile_rows=tile_rows)
    return pe.T


def init_params(key):
    """Deterministic param init mimicking PyTorch nn.Linear defaults
    (uniform(-1/sqrt(fan_in), 1/sqrt(fan_in)))."""
    k1, k2, k3, k4 = jax.random.split(key, 4)
    # linear_A: Linear(2, 2*dim_pe) stored input-major [in=2, out=H1] (x @ W)
    lim_a = 1.0 / jnp.sqrt(2.0)
    wA = jax.random.uniform(k1, (2, H1), jnp.float32, -lim_a, lim_a)
    bA = jax.random.uniform(k2, (H1,), jnp.float32, -lim_a, lim_a)
    # pe_encoder Linear(2*dim_pe, dim_pe) -> [in=H1, out=DIM_PE]
    lim_2 = 1.0 / jnp.sqrt(float(H1))
    w2 = jax.random.uniform(k3, (H1, DIM_PE), jnp.float32, -lim_2, lim_2)
    b2 = jax.random.uniform(k4, (DIM_PE,), jnp.float32, -lim_2, lim_2)
    return wA, bA, w2, b2


def reference_forward(eig_vals, eig_vecs, params):
    """Pure-JAX reference of the PyTorch forward (eval mode)."""
    wA, bA, w2, b2 = params
    pos_enc = jnp.concatenate([eig_vecs[..., None], eig_vals], axis=2)  # [N,K,2]
    empty_mask = jnp.isnan(pos_enc)
    pos_enc = jnp.where(empty_mask, 0.0, pos_enc)
    pos_enc = pos_enc @ wA + bA                                          # linear_A
    pos_enc = jnp.maximum(pos_enc, 0.0)                                  # ReLU
    pos_enc = pos_enc @ w2 + b2                                          # Linear
    pos_enc = jnp.maximum(pos_enc, 0.0)                                  # ReLU
    pos_enc = jnp.where(empty_mask[:, :, 0][..., None], 0.0, pos_enc)
    return jnp.sum(pos_enc, axis=1)                                      # [N, dim_pe]


if __name__ == "__main__":
    key = jax.random.PRNGKey(0)
    kp, kv, ke = jax.random.split(key, 3)

    params = init_params(kp)

    N, K = 200, MAX_FREQS                       # small, non-tile-aligned node count
    eig_vecs = jax.random.normal(kv, (N, K), jnp.float32)
    eig_vals = jax.random.normal(ke, (N, K, 1), jnp.float32) * 0.1

    # Inject a few NaN padding entries to exercise the empty_mask path.
    eig_vecs = eig_vecs.at[5, 0].set(jnp.nan)
    eig_vecs = eig_vecs.at[100, 0].set(jnp.nan)
    eig_vals = eig_vals.at[7, 0, 0].set(jnp.nan)

    out = lap_pe_node_encoder(eig_vals, eig_vecs, params)
    out = jax.block_until_ready(out)

    ref = reference_forward(eig_vals, eig_vecs, params)
    assert out.shape == (N, DIM_PE), out.shape
    assert jnp.allclose(out, ref, atol=1e-5, rtol=1e-5), "mismatch vs reference"

    # Feature-major path (primary, transpose-free) must also match.
    out_fm = jax.block_until_ready(
        lap_pe_node_encoder_feature_major(eig_vals, eig_vecs, params))
    assert out_fm.shape == (DIM_PE, N), out_fm.shape
    assert jnp.allclose(out_fm.T, ref, atol=1e-5, rtol=1e-5), "fm mismatch"

    print("KERNEL_OK")
</pallas_src>

<mosaic_0001>
module attributes {stable_mosaic.version = 11 : i64} {
  func.func @_lappe_kernel(%arg0: i32, %arg1: memref<2x2x128xf32, #tpu.memory_space<vmem>>, %arg2: memref<2x8xf32, #tpu.memory_space<smem>>, %arg3: memref<8xf32, #tpu.memory_space<smem>>, %arg4: memref<8x4xf32, #tpu.memory_space<smem>>, %arg5: memref<4xf32, #tpu.memory_space<smem>>, %arg6: memref<4x2x128xf32, #tpu.memory_space<vmem>>) attributes {dimension_semantics = [#tpu.dimension_semantics<parallel>], iteration_bounds = array<i64: 1>, scalar_prefetch = 0 : i64, scratch_operands = 0 : i64, tpu.core_type = #tpu.core_type<tc>, window_params = [{transform_indices = @transform_0, window_bounds = array<i64: 2, 2, 128>}, {transform_indices = @transform_1, window_bounds = array<i64: 2, 8>}, {transform_indices = @transform_2, window_bounds = array<i64: 8>}, {transform_indices = @transform_3, window_bounds = array<i64: 8, 4>}, {transform_indices = @transform_4, window_bounds = array<i64: 4>}, {transform_indices = @transform_5, window_bounds = array<i64: 4, 2, 128>}]} {
    %c0 = arith.constant 0 : index
    %c0_0 = arith.constant 0 : index
    %c0_1 = arith.constant 0 : index
    %0 = vector.load %arg1[%c0, %c0_0, %c0_1] : memref<2x2x128xf32, #tpu.memory_space<vmem>>, vector<1x2x128xf32>
    %1 = vector.shape_cast %0 : vector<1x2x128xf32> to vector<2x128xf32>
    %c1 = arith.constant 1 : index
    %c0_2 = arith.constant 0 : index
    %c0_3 = arith.constant 0 : index
    %2 = vector.load %arg1[%c1, %c0_2, %c0_3] : memref<2x2x128xf32, #tpu.memory_space<vmem>>, vector<1x2x128xf32>
    %3 = vector.shape_cast %2 : vector<1x2x128xf32> to vector<2x128xf32>
    %4 = arith.cmpf one, %1, %1 : vector<2x128xf32>
    %5 = arith.cmpf one, %3, %3 : vector<2x128xf32>
    %cst = arith.constant 0.000000e+00 : f32
    %6 = vector.broadcast %cst : f32 to vector<2x128xf32>
    %7 = arith.select %4, %6, %1 : vector<2x128xi1>, vector<2x128xf32>
    %cst_4 = arith.constant 0.000000e+00 : f32
    %8 = vector.broadcast %cst_4 : f32 to vector<2x128xf32>
    %9 = arith.select %5, %8, %3 : vector<2x128xi1>, vector<2x128xf32>
    %c0_5 = arith.constant 0 : index
    %c0_6 = arith.constant 0 : index
    %10 = memref.load %arg2[%c0_5, %c0_6] : memref<2x8xf32, #tpu.memory_space<smem>>
    %c0_7 = arith.constant 0 : index
    %c1_8 = arith.constant 1 : index
    %11 = memref.load %arg2[%c0_7, %c1_8] : memref<2x8xf32, #tpu.memory_space<smem>>
    %c0_9 = arith.constant 0 : index
    %c2 = arith.constant 2 : index
    %12 = memref.load %arg2[%c0_9, %c2] : memref<2x8xf32, #tpu.memory_space<smem>>
    %c0_10 = arith.constant 0 : index
    %c3 = arith.constant 3 : index
    %13 = memref.load %arg2[%c0_10, %c3] : memref<2x8xf32, #tpu.memory_space<smem>>
    %c0_11 = arith.constant 0 : index
    %c4 = arith.constant 4 : index
    %14 = memref.load %arg2[%c0_11, %c4] : memref<2x8xf32, #tpu.memory_space<smem>>
    %c0_12 = arith.constant 0 : index
    %c5 = arith.constant 5 : index
    %15 = memref.load %arg2[%c0_12, %c5] : memref<2x8xf32, #tpu.memory_space<smem>>
    %c0_13 = arith.constant 0 : index
    %c6 = arith.constant 6 : index
    %16 = memref.load %arg2[%c0_13, %c6] : memref<2x8xf32, #tpu.memory_space<smem>>
    %c0_14 = arith.constant 0 : index
    %c7 = arith.constant 7 : index
    %17 = memref.load %arg2[%c0_14, %c7] : memref<2x8xf32, #tpu.memory_space<smem>>
    %c1_15 = arith.constant 1 : index
    %c0_16 = arith.constant 0 : index
    %18 = memref.load %arg2[%c1_15, %c0_16] : memref<2x8xf32, #tpu.memory_space<smem>>
    %c1_17 = arith.constant 1 : index
    %c1_18 = arith.constant 1 : index
    %19 = memref.load %arg2[%c1_17, %c1_18] : memref<2x8xf32, #tpu.memory_space<smem>>
    %c1_19 = arith.constant 1 : index
    %c2_20 = arith.constant 2 : index
    %20 = memref.load %arg2[%c1_19, %c2_20] : memref<2x8xf32, #tpu.memory_space<smem>>
    %c1_21 = arith.constant 1 : index
    %c3_22 = arith.constant 3 : index
    %21 = memref.load %arg2[%c1_21, %c3_22] : memref<2x8xf32, #tpu.memory_space<smem>>
    %c1_23 = arith.constant 1 : index
    %c4_24 = arith.constant 4 : index
    %22 = memref.load %arg2[%c1_23, %c4_24] : memref<2x8xf32, #tpu.memory_space<smem>>
    %c1_25 = arith.constant 1 : index
    %c5_26 = arith.constant 5 : index
    %23 = memref.load %arg2[%c1_25, %c5_26] : memref<2x8xf32, #tpu.memory_space<smem>>
    %c1_27 = arith.constant 1 : index
    %c6_28 = arith.constant 6 : index
    %24 = memref.load %arg2[%c1_27, %c6_28] : memref<2x8xf32, #tpu.memory_space<smem>>
    %c1_29 = arith.constant 1 : index
    %c7_30 = arith.constant 7 : index
    %25 = memref.load %arg2[%c1_29, %c7_30] : memref<2x8xf32, #tpu.memory_space<smem>>
    %c0_31 = arith.constant 0 : index
    %26 = memref.load %arg3[%c0_31] : memref<8xf32, #tpu.memory_space<smem>>
    %c1_32 = arith.constant 1 : index
    %27 = memref.load %arg3[%c1_32] : memref<8xf32, #tpu.memory_space<smem>>
    %c2_33 = arith.constant 2 : index
    %28 = memref.load %arg3[%c2_33] : memref<8xf32, #tpu.memory_space<smem>>
    %c3_34 = arith.constant 3 : index
    %29 = memref.load %arg3[%c3_34] : memref<8xf32, #tpu.memory_space<smem>>
    %c4_35 = arith.constant 4 : index
    %30 = memref.load %arg3[%c4_35] : memref<8xf32, #tpu.memory_space<smem>>
    %c5_36 = arith.constant 5 : index
    %31 = memref.load %arg3[%c5_36] : memref<8xf32, #tpu.memory_space<smem>>
    %c6_37 = arith.constant 6 : index
    %32 = memref.load %arg3[%c6_37] : memref<8xf32, #tpu.memory_space<smem>>
    %c7_38 = arith.constant 7 : index
    %33 = memref.load %arg3[%c7_38] : memref<8xf32, #tpu.memory_space<smem>>
    %c0_39 = arith.constant 0 : index
    %c0_40 = arith.constant 0 : index
    %34 = memref.load %arg4[%c0_39, %c0_40] : memref<8x4xf32, #tpu.memory_space<smem>>
    %c0_41 = arith.constant 0 : index
    %c1_42 = arith.constant 1 : index
    %35 = memref.load %arg4[%c0_41, %c1_42] : memref<8x4xf32, #tpu.memory_space<smem>>
    %c0_43 = arith.constant 0 : index
    %c2_44 = arith.constant 2 : index
    %36 = memref.load %arg4[%c0_43, %c2_44] : memref<8x4xf32, #tpu.memory_space<smem>>
    %c0_45 = arith.constant 0 : index
    %c3_46 = arith.constant 3 : index
    %37 = memref.load %arg4[%c0_45, %c3_46] : memref<8x4xf32, #tpu.memory_space<smem>>
    %c1_47 = arith.constant 1 : index
    %c0_48 = arith.constant 0 : index
    %38 = memref.load %arg4[%c1_47, %c0_48] : memref<8x4xf32, #tpu.memory_space<smem>>
    %c1_49 = arith.constant 1 : index
    %c1_50 = arith.constant 1 : index
    %39 = memref.load %arg4[%c1_49, %c1_50] : memref<8x4xf32, #tpu.memory_space<smem>>
    %c1_51 = arith.constant 1 : index
    %c2_52 = arith.constant 2 : index
    %40 = memref.load %arg4[%c1_51, %c2_52] : memref<8x4xf32, #tpu.memory_space<smem>>
    %c1_53 = arith.constant 1 : index
    %c3_54 = arith.constant 3 : index
    %41 = memref.load %arg4[%c1_53, %c3_54] : memref<8x4xf32, #tpu.memory_space<smem>>
    %c2_55 = arith.constant 2 : index
    %c0_56 = arith.constant 0 : index
    %42 = memref.load %arg4[%c2_55, %c0_56] : memref<8x4xf32, #tpu.memory_space<smem>>
    %c2_57 = arith.constant 2 : index
    %c1_58 = arith.constant 1 : index
    %43 = memref.load %arg4[%c2_57, %c1_58] : memref<8x4xf32, #tpu.memory_space<smem>>
    %c2_59 = arith.constant 2 : index
    %c2_60 = arith.constant 2 : index
    %44 = memref.load %arg4[%c2_59, %c2_60] : memref<8x4xf32, #tpu.memory_space<smem>>
    %c2_61 = arith.constant 2 : index
    %c3_62 = arith.constant 3 : index
    %45 = memref.load %arg4[%c2_61, %c3_62] : memref<8x4xf32, #tpu.memory_space<smem>>
    %c3_63 = arith.constant 3 : index
    %c0_64 = arith.constant 0 : index
    %46 = memref.load %arg4[%c3_63, %c0_64] : memref<8x4xf32, #tpu.memory_space<smem>>
    %c3_65 = arith.constant 3 : index
    %c1_66 = arith.constant 1 : index
    %47 = memref.load %arg4[%c3_65, %c1_66] : memref<8x4xf32, #tpu.memory_space<smem>>
    %c3_67 = arith.constant 3 : index
    %c2_68 = arith.constant 2 : index
    %48 = memref.load %arg4[%c3_67, %c2_68] : memref<8x4xf32, #tpu.memory_space<smem>>
    %c3_69 = arith.constant 3 : index
    %c3_70 = arith.constant 3 : index
    %49 = memref.load %arg4[%c3_69, %c3_70] : memref<8x4xf32, #tpu.memory_space<smem>>
    %c4_71 = arith.constant 4 : index
    %c0_72 = arith.constant 0 : index
    %50 = memref.load %arg4[%c4_71, %c0_72] : memref<8x4xf32, #tpu.memory_space<smem>>
    %c4_73 = arith.constant 4 : index
    %c1_74 = arith.constant 1 : index
    %51 = memref.load %arg4[%c4_73, %c1_74] : memref<8x4xf32, #tpu.memory_space<smem>>
    %c4_75 = arith.constant 4 : index
    %c2_76 = arith.constant 2 : index
    %52 = memref.load %arg4[%c4_75, %c2_76] : memref<8x4xf32, #tpu.memory_space<smem>>
    %c4_77 = arith.constant 4 : index
    %c3_78 = arith.constant 3 : index
    %53 = memref.load %arg4[%c4_77, %c3_78] : memref<8x4xf32, #tpu.memory_space<smem>>
    %c5_79 = arith.constant 5 : index
    %c0_80 = arith.constant 0 : index
    %54 = memref.load %arg4[%c5_79, %c0_80] : memref<8x4xf32, #tpu.memory_space<smem>>
    %c5_81 = arith.constant 5 : index
    %c1_82 = arith.constant 1 : index
    %55 = memref.load %arg4[%c5_81, %c1_82] : memref<8x4xf32, #tpu.memory_space<smem>>
    %c5_83 = arith.constant 5 : index
    %c2_84 = arith.constant 2 : index
    %56 = memref.load %arg4[%c5_83, %c2_84] : memref<8x4xf32, #tpu.memory_space<smem>>
    %c5_85 = arith.constant 5 : index
    %c3_86 = arith.constant 3 : index
    %57 = memref.load %arg4[%c5_85, %c3_86] : memref<8x4xf32, #tpu.memory_space<smem>>
    %c6_87 = arith.constant 6 : index
    %c0_88 = arith.constant 0 : index
    %58 = memref.load %arg4[%c6_87, %c0_88] : memref<8x4xf32, #tpu.memory_space<smem>>
    %c6_89 = arith.constant 6 : index
    %c1_90 = arith.constant 1 : index
    %59 = memref.load %arg4[%c6_89, %c1_90] : memref<8x4xf32, #tpu.memory_space<smem>>
    %c6_91 = arith.constant 6 : index
    %c2_92 = arith.constant 2 : index
    %60 = memref.load %arg4[%c6_91, %c2_92] : memref<8x4xf32, #tpu.memory_space<smem>>
    %c6_93 = arith.constant 6 : index
    %c3_94 = arith.constant 3 : index
    %61 = memref.load %arg4[%c6_93, %c3_94] : memref<8x4xf32, #tpu.memory_space<smem>>
    %c7_95 = arith.constant 7 : index
    %c0_96 = arith.constant 0 : index
    %62 = memref.load %arg4[%c7_95, %c0_96] : memref<8x4xf32, #tpu.memory_space<smem>>
    %c7_97 = arith.constant 7 : index
    %c1_98 = arith.constant 1 : index
    %63 = memref.load %arg4[%c7_97, %c1_98] : memref<8x4xf32, #tpu.memory_space<smem>>
    %c7_99 = arith.constant 7 : index
    %c2_100 = arith.constant 2 : index
    %64 = memref.load %arg4[%c7_99, %c2_100] : memref<8x4xf32, #tpu.memory_space<smem>>
    %c7_101 = arith.constant 7 : index
    %c3_102 = arith.constant 3 : index
    %65 = memref.load %arg4[%c7_101, %c3_102] : memref<8x4xf32, #tpu.memory_space<smem>>
    %c0_103 = arith.constant 0 : index
    %66 = memref.load %arg5[%c0_103] : memref<4xf32, #tpu.memory_space<smem>>
    %c1_104 = arith.constant 1 : index
    %67 = memref.load %arg5[%c1_104] : memref<4xf32, #tpu.memory_space<smem>>
    %c2_105 = arith.constant 2 : index
    %68 = memref.load %arg5[%c2_105] : memref<4xf32, #tpu.memory_space<smem>>
    %c3_106 = arith.constant 3 : index
    %69 = memref.load %arg5[%c3_106] : memref<4xf32, #tpu.memory_space<smem>>
    %70 = vector.broadcast %10 : f32 to vector<2x128xf32>
    %71 = arith.mulf %7, %70 : vector<2x128xf32>
    %72 = vector.broadcast %18 : f32 to vector<2x128xf32>
    %73 = arith.mulf %9, %72 : vector<2x128xf32>
    %74 = arith.addf %71, %73 : vector<2x128xf32>
    %75 = vector.broadcast %26 : f32 to vector<2x128xf32>
    %76 = arith.addf %74, %75 : vector<2x128xf32>
    %cst_107 = arith.constant 0.000000e+00 : f32
    %77 = vector.broadcast %cst_107 : f32 to vector<2x128xf32>
    %78 = arith.maximumf %76, %77 : vector<2x128xf32>
    %79 = vector.broadcast %34 : f32 to vector<2x128xf32>
    %80 = arith.mulf %78, %79 : vector<2x128xf32>
    %81 = vector.broadcast %35 : f32 to vector<2x128xf32>
    %82 = arith.mulf %78, %81 : vector<2x128xf32>
    %83 = vector.broadcast %36 : f32 to vector<2x128xf32>
    %84 = arith.mulf %78, %83 : vector<2x128xf32>
    %85 = vector.broadcast %37 : f32 to vector<2x128xf32>
    %86 = arith.mulf %78, %85 : vector<2x128xf32>
    %87 = vector.broadcast %11 : f32 to vector<2x128xf32>
    %88 = arith.mulf %7, %87 : vector<2x128xf32>
    %89 = vector.broadcast %19 : f32 to vector<2x128xf32>
    %90 = arith.mulf %9, %89 : vector<2x128xf32>
    %91 = arith.addf %88, %90 : vector<2x128xf32>
    %92 = vector.broadcast %27 : f32 to vector<2x128xf32>
    %93 = arith.addf %91, %92 : vector<2x128xf32>
    %cst_108 = arith.constant 0.000000e+00 : f32
    %94 = vector.broadcast %cst_108 : f32 to vector<2x128xf32>
    %95 = arith.maximumf %93, %94 : vector<2x128xf32>
    %96 = vector.broadcast %38 : f32 to vector<2x128xf32>
    %97 = arith.mulf %95, %96 : vector<2x128xf32>
    %98 = arith.addf %80, %97 : vector<2x128xf32>
    %99 = vector.broadcast %39 : f32 to vector<2x128xf32>
    %100 = arith.mulf %95, %99 : vector<2x128xf32>
    %101 = arith.addf %82, %100 : vector<2x128xf32>
    %102 = vector.broadcast %40 : f32 to vector<2x128xf32>
    %103 = arith.mulf %95, %102 : vector<2x128xf32>
    %104 = arith.addf %84, %103 : vector<2x128xf32>
    %105 = vector.broadcast %41 : f32 to vector<2x128xf32>
    %106 = arith.mulf %95, %105 : vector<2x128xf32>
    %107 = arith.addf %86, %106 : vector<2x128xf32>
    %108 = vector.broadcast %12 : f32 to vector<2x128xf32>
    %109 = arith.mulf %7, %108 : vector<2x128xf32>
    %110 = vector.broadcast %20 : f32 to vector<2x128xf32>
    %111 = arith.mulf %9, %110 : vector<2x128xf32>
    %112 = arith.addf %109, %111 : vector<2x128xf32>
    %113 = vector.broadcast %28 : f32 to vector<2x128xf32>
    %114 = arith.addf %112, %113 : vector<2x128xf32>
    %cst_109 = arith.constant 0.000000e+00 : f32
    %115 = vector.broadcast %cst_109 : f32 to vector<2x128xf32>
    %116 = arith.maximumf %114, %115 : vector<2x128xf32>
    %117 = vector.broadcast %42 : f32 to vector<2x128xf32>
    %118 = arith.mulf %116, %117 : vector<2x128xf32>
    %119 = arith.addf %98, %118 : vector<2x128xf32>
    %120 = vector.broadcast %43 : f32 to vector<2x128xf32>
    %121 = arith.mulf %116, %120 : vector<2x128xf32>
    %122 = arith.addf %101, %121 : vector<2x128xf32>
    %123 = vector.broadcast %44 : f32 to vector<2x128xf32>
    %124 = arith.mulf %116, %123 : vector<2x128xf32>
    %125 = arith.addf %104, %124 : vector<2x128xf32>
    %126 = vector.broadcast %45 : f32 to vector<2x128xf32>
    %127 = arith.mulf %116, %126 : vector<2x128xf32>
    %128 = arith.addf %107, %127 : vector<2x128xf32>
    %129 = vector.broadcast %13 : f32 to vector<2x128xf32>
    %130 = arith.mulf %7, %129 : vector<2x128xf32>
    %131 = vector.broadcast %21 : f32 to vector<2x128xf32>
    %132 = arith.mulf %9, %131 : vector<2x128xf32>
    %133 = arith.addf %130, %132 : vector<2x128xf32>
    %134 = vector.broadcast %29 : f32 to vector<2x128xf32>
    %135 = arith.addf %133, %134 : vector<2x128xf32>
    %cst_110 = arith.constant 0.000000e+00 : f32
    %136 = vector.broadcast %cst_110 : f32 to vector<2x128xf32>
    %137 = arith.maximumf %135, %136 : vector<2x128xf32>
    %138 = vector.broadcast %46 : f32 to vector<2x128xf32>
    %139 = arith.mulf %137, %138 : vector<2x128xf32>
    %140 = arith.addf %119, %139 : vector<2x128xf32>
    %141 = vector.broadcast %47 : f32 to vector<2x128xf32>
    %142 = arith.mulf %137, %141 : vector<2x128xf32>
    %143 = arith.addf %122, %142 : vector<2x128xf32>
    %144 = vector.broadcast %48 : f32 to vector<2x128xf32>
    %145 = arith.mulf %137, %144 : vector<2x128xf32>
    %146 = arith.addf %125, %145 : vector<2x128xf32>
    %147 = vector.broadcast %49 : f32 to vector<2x128xf32>
    %148 = arith.mulf %137, %147 : vector<2x128xf32>
    %149 = arith.addf %128, %148 : vector<2x128xf32>
    %150 = vector.broadcast %14 : f32 to vector<2x128xf32>
    %151 = arith.mulf %7, %150 : vector<2x128xf32>
    %152 = vector.broadcast %22 : f32 to vector<2x128xf32>
    %153 = arith.mulf %9, %152 : vector<2x128xf32>
    %154 = arith.addf %151, %153 : vector<2x128xf32>
    %155 = vector.broadcast %30 : f32 to vector<2x128xf32>
    %156 = arith.addf %154, %155 : vector<2x128xf32>
    %cst_111 = arith.constant 0.000000e+00 : f32
    %157 = vector.broadcast %cst_111 : f32 to vector<2x128xf32>
    %158 = arith.maximumf %156, %157 : vector<2x128xf32>
    %159 = vector.broadcast %50 : f32 to vector<2x128xf32>
    %160 = arith.mulf %158, %159 : vector<2x128xf32>
    %161 = arith.addf %140, %160 : vector<2x128xf32>
    %162 = vector.broadcast %51 : f32 to vector<2x128xf32>
    %163 = arith.mulf %158, %162 : vector<2x128xf32>
    %164 = arith.addf %143, %163 : vector<2x128xf32>
    %165 = vector.broadcast %52 : f32 to vector<2x128xf32>
    %166 = arith.mulf %158, %165 : vector<2x128xf32>
    %167 = arith.addf %146, %166 : vector<2x128xf32>
    %168 = vector.broadcast %53 : f32 to vector<2x128xf32>
    %169 = arith.mulf %158, %168 : vector<2x128xf32>
    %170 = arith.addf %149, %169 : vector<2x128xf32>
    %171 = vector.broadcast %15 : f32 to vector<2x128xf32>
    %172 = arith.mulf %7, %171 : vector<2x128xf32>
    %173 = vector.broadcast %23 : f32 to vector<2x128xf32>
    %174 = arith.mulf %9, %173 : vector<2x128xf32>
    %175 = arith.addf %172, %174 : vector<2x128xf32>
    %176 = vector.broadcast %31 : f32 to vector<2x128xf32>
    %177 = arith.addf %175, %176 : vector<2x128xf32>
    %cst_112 = arith.constant 0.000000e+00 : f32
    %178 = vector.broadcast %cst_112 : f32 to vector<2x128xf32>
    %179 = arith.maximumf %177, %178 : vector<2x128xf32>
    %180 = vector.broadcast %54 : f32 to vector<2x128xf32>
    %181 = arith.mulf %179, %180 : vector<2x128xf32>
    %182 = arith.addf %161, %181 : vector<2x128xf32>
    %183 = vector.broadcast %55 : f32 to vector<2x128xf32>
    %184 = arith.mulf %179, %183 : vector<2x128xf32>
    %185 = arith.addf %164, %184 : vector<2x128xf32>
    %186 = vector.broadcast %56 : f32 to vector<2x128xf32>
    %187 = arith.mulf %179, %186 : vector<2x128xf32>
    %188 = arith.addf %167, %187 : vector<2x128xf32>
    %189 = vector.broadcast %57 : f32 to vector<2x128xf32>
    %190 = arith.mulf %179, %189 : vector<2x128xf32>
    %191 = arith.addf %170, %190 : vector<2x128xf32>
    %192 = vector.broadcast %16 : f32 to vector<2x128xf32>
    %193 = arith.mulf %7, %192 : vector<2x128xf32>
    %194 = vector.broadcast %24 : f32 to vector<2x128xf32>
    %195 = arith.mulf %9, %194 : vector<2x128xf32>
    %196 = arith.addf %193, %195 : vector<2x128xf32>
    %197 = vector.broadcast %32 : f32 to vector<2x128xf32>
    %198 = arith.addf %196, %197 : vector<2x128xf32>
    %cst_113 = arith.constant 0.000000e+00 : f32
    %199 = vector.broadcast %cst_113 : f32 to vector<2x128xf32>
    %200 = arith.maximumf %198, %199 : vector<2x128xf32>
    %201 = vector.broadcast %58 : f32 to vector<2x128xf32>
    %202 = arith.mulf %200, %201 : vector<2x128xf32>
    %203 = arith.addf %182, %202 : vector<2x128xf32>
    %204 = vector.broadcast %59 : f32 to vector<2x128xf32>
    %205 = arith.mulf %200, %204 : vector<2x128xf32>
    %206 = arith.addf %185, %205 : vector<2x128xf32>
    %207 = vector.broadcast %60 : f32 to vector<2x128xf32>
    %208 = arith.mulf %200, %207 : vector<2x128xf32>
    %209 = arith.addf %188, %208 : vector<2x128xf32>
    %210 = vector.broadcast %61 : f32 to vector<2x128xf32>
    %211 = arith.mulf %200, %210 : vector<2x128xf32>
    %212 = arith.addf %191, %211 : vector<2x128xf32>
    %213 = vector.broadcast %17 : f32 to vector<2x128xf32>
    %214 = arith.mulf %7, %213 : vector<2x128xf32>
    %215 = vector.broadcast %25 : f32 to vector<2x128xf32>
    %216 = arith.mulf %9, %215 : vector<2x128xf32>
    %217 = arith.addf %214, %216 : vector<2x128xf32>
    %218 = vector.broadcast %33 : f32 to vector<2x128xf32>
    %219 = arith.addf %217, %218 : vector<2x128xf32>
    %cst_114 = arith.constant 0.000000e+00 : f32
    %220 = vector.broadcast %cst_114 : f32 to vector<2x128xf32>
    %221 = arith.maximumf %219, %220 : vector<2x128xf32>
    %222 = vector.broadcast %62 : f32 to vector<2x128xf32>
    %223 = arith.mulf %221, %222 : vector<2x128xf32>
    %224 = arith.addf %203, %223 : vector<2x128xf32>
    %225 = vector.broadcast %63 : f32 to vector<2x128xf32>
    %226 = arith.mulf %221, %225 : vector<2x128xf32>
    %227 = arith.addf %206, %226 : vector<2x128xf32>
    %228 = vector.broadcast %64 : f32 to vector<2x128xf32>
    %229 = arith.mulf %221, %228 : vector<2x128xf32>
    %230 = arith.addf %209, %229 : vector<2x128xf32>
    %231 = vector.broadcast %65 : f32 to vector<2x128xf32>
    %232 = arith.mulf %221, %231 : vector<2x128xf32>
    %233 = arith.addf %212, %232 : vector<2x128xf32>
    %234 = vector.broadcast %66 : f32 to vector<2x128xf32>
    %235 = arith.addf %224, %234 : vector<2x128xf32>
    %cst_115 = arith.constant 0.000000e+00 : f32
    %236 = vector.broadcast %cst_115 : f32 to vector<2x128xf32>
    %237 = arith.maximumf %235, %236 : vector<2x128xf32>
    %cst_116 = arith.constant 0.000000e+00 : f32
    %238 = vector.broadcast %cst_116 : f32 to vector<2x128xf32>
    %239 = arith.select %4, %238, %237 : vector<2x128xi1>, vector<2x128xf32>
    %c0_117 = arith.constant 0 : index
    %c0_118 = arith.constant 0 : index
    %c0_119 = arith.constant 0 : index
    %240 = vector.load %arg6[%c0_117, %c0_118, %c0_119] : memref<4x2x128xf32, #tpu.memory_space<vmem>>, vector<1x2x128xf32>
    %241 = vector.shape_cast %240 : vector<1x2x128xf32> to vector<2x128xf32>
    %242 = vector.shape_cast %239 : vector<2x128xf32> to vector<1x2x128xf32>
    tpu.vector_store %arg6[%c0_117, %c0_118, %c0_119], %242 {strides = array<i32>} : memref<4x2x128xf32, #tpu.memory_space<vmem>>, vector<1x2x128xf32>,
    %243 = vector.broadcast %67 : f32 to vector<2x128xf32>
    %244 = arith.addf %227, %243 : vector<2x128xf32>
    %cst_120 = arith.constant 0.000000e+00 : f32
    %245 = vector.broadcast %cst_120 : f32 to vector<2x128xf32>
    %246 = arith.maximumf %244, %245 : vector<2x128xf32>
    %cst_121 = arith.constant 0.000000e+00 : f32
    %247 = vector.broadcast %cst_121 : f32 to vector<2x128xf32>
    %248 = arith.select %4, %247, %246 : vector<2x128xi1>, vector<2x128xf32>
    %c1_122 = arith.constant 1 : index
    %c0_123 = arith.constant 0 : index
    %c0_124 = arith.constant 0 : index
    %249 = vector.load %arg6[%c1_122, %c0_123, %c0_124] : memref<4x2x128xf32, #tpu.memory_space<vmem>>, vector<1x2x128xf32>
    %250 = vector.shape_cast %249 : vector<1x2x128xf32> to vector<2x128xf32>
    %251 = vector.shape_cast %248 : vector<2x128xf32> to vector<1x2x128xf32>
    tpu.vector_store %arg6[%c1_122, %c0_123, %c0_124], %251 {strides = array<i32>} : memref<4x2x128xf32, #tpu.memory_space<vmem>>, vector<1x2x128xf32>,
    %252 = vector.broadcast %68 : f32 to vector<2x128xf32>
    %253 = arith.addf %230, %252 : vector<2x128xf32>
    %cst_125 = arith.constant 0.000000e+00 : f32
    %254 = vector.broadcast %cst_125 : f32 to vector<2x128xf32>
    %255 = arith.maximumf %253, %254 : vector<2x128xf32>
    %cst_126 = arith.constant 0.000000e+00 : f32
    %256 = vector.broadcast %cst_126 : f32 to vector<2x128xf32>
    %257 = arith.select %4, %256, %255 : vector<2x128xi1>, vector<2x128xf32>
    %c2_127 = arith.constant 2 : index
    %c0_128 = arith.constant 0 : index
    %c0_129 = arith.constant 0 : index
    %258 = vector.load %arg6[%c2_127, %c0_128, %c0_129] : memref<4x2x128xf32, #tpu.memory_space<vmem>>, vector<1x2x128xf32>
    %259 = vector.shape_cast %258 : vector<1x2x128xf32> to vector<2x128xf32>
    %260 = vector.shape_cast %257 : vector<2x128xf32> to vector<1x2x128xf32>
    tpu.vector_store %arg6[%c2_127, %c0_128, %c0_129], %260 {strides = array<i32>} : memref<4x2x128xf32, #tpu.memory_space<vmem>>, vector<1x2x128xf32>,
    %261 = vector.broadcast %69 : f32 to vector<2x128xf32>
    %262 = arith.addf %233, %261 : vector<2x128xf32>
    %cst_130 = arith.constant 0.000000e+00 : f32
    %263 = vector.broadcast %cst_130 : f32 to vector<2x128xf32>
    %264 = arith.maximumf %262, %263 : vector<2x128xf32>
    %cst_131 = arith.constant 0.000000e+00 : f32
    %265 = vector.broadcast %cst_131 : f32 to vector<2x128xf32>
    %266 = arith.select %4, %265, %264 : vector<2x128xi1>, vector<2x128xf32>
    %c3_132 = arith.constant 3 : index
    %c0_133 = arith.constant 0 : index
    %c0_134 = arith.constant 0 : index
    %267 = vector.load %arg6[%c3_132, %c0_133, %c0_134] : memref<4x2x128xf32, #tpu.memory_space<vmem>>, vector<1x2x128xf32>
    %268 = vector.shape_cast %267 : vector<1x2x128xf32> to vector<2x128xf32>
    %269 = vector.shape_cast %266 : vector<2x128xf32> to vector<1x2x128xf32>
    tpu.vector_store %arg6[%c3_132, %c0_133, %c0_134], %269 {strides = array<i32>} : memref<4x2x128xf32, #tpu.memory_space<vmem>>, vector<1x2x128xf32>,
    return
  }
  func.func @transform_0(%arg0: i32) -> (i32, i32, i32) {
    %c0_i32 = arith.constant 0 : i32
    %c0_i32_0 = arith.constant 0 : i32
    %c0_i32_1 = arith.constant 0 : i32
    return %c0_i32, %arg0, %c0_i32_0 : i32, i32, i32
  }
  func.func @transform_1(%arg0: i32) -> (i32, i32) {
    %c0_i32 = arith.constant 0 : i32
    %c0_i32_0 = arith.constant 0 : i32
    %c0_i32_1 = arith.constant 0 : i32
    return %c0_i32, %c0_i32_0 : i32, i32
  }
  func.func @transform_2(%arg0: i32) -> i32 {
    %c0_i32 = arith.constant 0 : i32
    %c0_i32_0 = arith.constant 0 : i32
    return %c0_i32 : i32
  }
  func.func @transform_3(%arg0: i32) -> (i32, i32) {
    %c0_i32 = arith.constant 0 : i32
    %c0_i32_0 = arith.constant 0 : i32
    %c0_i32_1 = arith.constant 0 : i32
    return %c0_i32, %c0_i32_0 : i32, i32
  }
  func.func @transform_4(%arg0: i32) -> i32 {
    %c0_i32 = arith.constant 0 : i32
    %c0_i32_0 = arith.constant 0 : i32
    return %c0_i32 : i32
  }
  func.func @transform_5(%arg0: i32) -> (i32, i32, i32) {
    %c0_i32 = arith.constant 0 : i32
    %c0_i32_0 = arith.constant 0 : i32
    %c0_i32_1 = arith.constant 0 : i32
    return %c0_i32, %arg0, %c0_i32_0 : i32, i32, i32
  }
}

</mosaic_0001>

<llo_original>
// kernel: tpu_custom_call.1
$region0: #{tpu_custom_call.1}
  #allocation0 [shape = 'u32[]', space=smem, size = 0x4, offset = 0x4, fixed_abs, tag = 'smem constant byte address 0x4 - core index']
  #allocation1 [shape = 'u32[144,128]{1,0:T(1,128)}', space=vmem, size = 0x12000, scoped, tag = 'internal scratch']
  %s0 = inlined_call_operand.vmem [shape: f32[2,2,128], index: 0, kind: input, shape index: {}]
  %s1 = inlined_call_operand.vmem [shape: f32[2,8], index: 1, kind: input, shape index: {}]
  %s2 = inlined_call_operand.vmem [shape: f32[8], index: 2, kind: input, shape index: {}]
  %s3 = inlined_call_operand.vmem [shape: f32[8,4], index: 3, kind: input, shape index: {}]
  %s4 = inlined_call_operand.vmem [shape: f32[4], index: 4, kind: input, shape index: {}]
  %s5 = inlined_call_operand.hbm [shape: f32[4,2,128], index: 5, kind: output, shape index: {}]
  %s6 = sld [smem:[#allocation0]]
  $region46: #{tpu_custom_call.1} parent=0
    _
  %s8 = ssub.s32 1, %s6
  %s9 = scalar_select 0, %s8, %s6
  $region1: #{tpu_custom_call.1} parent=0
    #allocation2 [shape = 'u8[1024]{0}', space=smem, size = 0x400, scoped, tag = 'input window, operand 1, single buffered']
    #allocation3 [shape = 's32[1]{0}', space=sflag, size = 0x4, scoped, tag = 'scoped memory for tpu_custom_call.1']
    #allocation4 [shape = 's32[1]{0}', space=sflag, size = 0x4, scoped, tag = 'scoped memory for tpu_custom_call.1']
    #allocation5 [shape = 'u8[512]{0}', space=smem, size = 0x200, scoped, tag = 'input window, operand 2, single buffered']
    #allocation6 [shape = 's32[1]{0}', space=sflag, size = 0x4, scoped, tag = 'scoped memory for tpu_custom_call.1']
    #allocation7 [shape = 'u8[4096]{0}', space=smem, size = 0x1000, scoped, tag = 'input window, operand 3, single buffered']
    #allocation8 [shape = 'u8[512]{0}', space=smem, size = 0x200, scoped, tag = 'input window, operand 4, single buffered']
    #allocation9 [shape = 's32[1]{0}', space=sflag, size = 0x4, scoped, tag = 'scoped memory for tpu_custom_call.1']
    #allocation10 [shape = 'u8[4096]{0}', space=vmem, size = 0x1000, scoped, tag = 'output window, operand 0, single buffered']
    %10 = vsyncpa [#allocation4], 0
    %11 = vsyncpa [#allocation6], 0
    %12 = vsyncpa [#allocation9], 0
    %13 = vsyncpa [#allocation3], 0
    // Predicated region
    $region2: #{tpu_custom_call.1} parent=1 // pred_check
      _
    $region3: #{tpu_custom_call.1} parent=1 // pred_check_branch
      %15 = sbr.rel (0) target = $region5
    $region4: #{tpu_custom_call.1} parent=1 // pred_region
      _
    $region5: #{tpu_custom_call.1} parent=1 // pred_fallthru
      _
    // Predicated region
    $region6: #{tpu_custom_call.1} parent=1 // pred_check
      _
    $region7: #{tpu_custom_call.1} parent=1 // pred_check_branch
      %17 = sbr.rel (0) target = $region9
    $region8: #{tpu_custom_call.1} parent=1 // pred_region
      %s19 = ssub.s32 32, 32
      %20 = vsyncadd [#allocation4], %s19
      %s22 = sshll.u32 %s1, 4
      %s23 = int_to_ptr.vmem [resolvable:$true] %s22
      %25 = dma.vmem_to_smem %s23, 32, [#allocation2], [#allocation4]
    $region9: #{tpu_custom_call.1} parent=1 // pred_fallthru
      _
    // Predicated region
    $region10: #{tpu_custom_call.1} parent=1 // pred_check
      _
    $region11: #{tpu_custom_call.1} parent=1 // pred_check_branch
      %27 = sbr.rel (0) target = $region13
    $region12: #{tpu_custom_call.1} parent=1 // pred_region
      %s29 = ssub.s32 16, 16
      %30 = vsyncadd [#allocation6], %s29
      %s32 = sshll.u32 %s2, 4
      %s33 = int_to_ptr.vmem [resolvable:$true] %s32
      %35 = dma.vmem_to_smem %s33, 16, [#allocation5], [#allocation6]
    $region13: #{tpu_custom_call.1} parent=1 // pred_fallthru
      _
    // Predicated region
    $region14: #{tpu_custom_call.1} parent=1 // pred_check
      _
    $region15: #{tpu_custom_call.1} parent=1 // pred_check_branch
      %37 = sbr.rel (0) target = $region17
    $region16: #{tpu_custom_call.1} parent=1 // pred_region
      %s39 = ssub.s32 128, 128
      %40 = vsyncadd [#allocation6], %s39
      %s42 = sshll.u32 %s3, 4
      %s43 = int_to_ptr.vmem [resolvable:$true] %s42
      %45 = dma.vmem_to_smem %s43, 128, [#allocation7], [#allocation6]
    $region17: #{tpu_custom_call.1} parent=1 // pred_fallthru
      _
    // Predicated region
    $region18: #{tpu_custom_call.1} parent=1 // pred_check
      _
    $region19: #{tpu_custom_call.1} parent=1 // pred_check_branch
      %47 = sbr.rel (0) target = $region21
    $region20: #{tpu_custom_call.1} parent=1 // pred_region
      %s49 = ssub.s32 16, 16
      %50 = vsyncadd [#allocation9], %s49
      %s52 = sshll.u32 %s4, 4
      %s53 = int_to_ptr.vmem [resolvable:$true] %s52
      %55 = dma.vmem_to_smem %s53, 16, [#allocation8], [#allocation9]
    $region21: #{tpu_custom_call.1} parent=1 // pred_fallthru
      _
    // Predicated region
    $region22: #{tpu_custom_call.1} parent=1 // pred_check
      _
    $region23: #{tpu_custom_call.1} parent=1 // pred_check_branch
      %57 = sbr.rel (0) target = $region25
    $region24: #{tpu_custom_call.1} parent=1 // pred_region
      %58 = dma.done [#allocation4], 32
    $region25: #{tpu_custom_call.1} parent=1 // pred_fallthru
      _
    // Predicated region
    $region26: #{tpu_custom_call.1} parent=1 // pred_check
      _
    $region27: #{tpu_custom_call.1} parent=1 // pred_check_branch
      %60 = sbr.rel (0) target = $region29
    $region28: #{tpu_custom_call.1} parent=1 // pred_region
      %61 = dma.done [#allocation6], 16
    $region29: #{tpu_custom_call.1} parent=1 // pred_fallthru
      _
    // Predicated region
    $region30: #{tpu_custom_call.1} parent=1 // pred_check
      _
    $region31: #{tpu_custom_call.1} parent=1 // pred_check_branch
      %63 = sbr.rel (0) target = $region33
    $region32: #{tpu_custom_call.1} parent=1 // pred_region
      %64 = dma.done [#allocation6], 128
    $region33: #{tpu_custom_call.1} parent=1 // pred_fallthru
      _
    // Predicated region
    $region34: #{tpu_custom_call.1} parent=1 // pred_check
      _
    $region35: #{tpu_custom_call.1} parent=1 // pred_check_branch
      %66 = sbr.rel (0) target = $region37
    $region36: #{tpu_custom_call.1} parent=1 // pred_region
      %67 = dma.done [#allocation9], 16
    $region37: #{tpu_custom_call.1} parent=1 // pred_fallthru
      _
    %68 = sfence
    %v69 = vld [vmem:[%s0] sm:$0x3]
    %s70 = scalar_lea.vmem %s0, 2
    %v71 = vld [vmem:[%s70] sm:$0x3]
    %vm72 = vcmp.ne.f32.partialorder %v69, %v69
    %vm73 = vcmp.ne.f32.partialorder %v71, %v71
    %v74 = vsel %vm72, 0.0, %v69
    %v75 = vsel %vm73, 0.0, %v71
    %s76 = sld [smem:[#allocation2]]
    %s77 = sld [smem:[#allocation2 + $0x1]]
    %s78 = sld [smem:[#allocation2 + $0x2]]
    %s79 = sld [smem:[#allocation2 + $0x3]]
    %s80 = sld [smem:[#allocation2 + $0x4]]
    %s81 = sld [smem:[#allocation2 + $0x5]]
    %s82 = sld [smem:[#allocation2 + $0x6]]
    %s83 = sld [smem:[#allocation2 + $0x7]]
    %s84 = sld [smem:[#allocation2 + $0x80]]
    %s85 = sld [smem:[#allocation2 + $0x81]]
    %s86 = sld [smem:[#allocation2 + $0x82]]
    %s87 = sld [smem:[#allocation2 + $0x83]]
    %s88 = sld [smem:[#allocation2 + $0x84]]
    %s89 = sld [smem:[#allocation2 + $0x85]]
    %s90 = sld [smem:[#allocation2 + $0x86]]
    %s91 = sld [smem:[#allocation2 + $0x87]]
    %s92 = sld [smem:[#allocation5]]
    %s93 = sld [smem:[#allocation5 + $0x1]]
    %s94 = sld [smem:[#allocation5 + $0x2]]
    %s95 = sld [smem:[#allocation5 + $0x3]]
    %s96 = sld [smem:[#allocation5 + $0x4]]
    %s97 = sld [smem:[#allocation5 + $0x5]]
    %s98 = sld [smem:[#allocation5 + $0x6]]
    %s99 = sld [smem:[#allocation5 + $0x7]]
    %s100 = sld [smem:[#allocation7]]
    %s101 = sld [smem:[#allocation7 + $0x1]]
    %s102 = sld [smem:[#allocation7 + $0x2]]
    %s103 = sld [smem:[#allocation7 + $0x3]]
    %s104 = sld [smem:[#allocation7 + $0x80]]
    %s105 = sld [smem:[#allocation7 + $0x81]]
    %s106 = sld [smem:[#allocation7 + $0x82]]
    %s107 = sld [smem:[#allocation7 + $0x83]]
    %s108 = sld [smem:[#allocation7 + $0x100]]
    %s109 = sld [smem:[#allocation7 + $0x101]]
    %s110 = sld [smem:[#allocation7 + $0x102]]
    %s111 = sld [smem:[#allocation7 + $0x103]]
    %s112 = sld [smem:[#allocation7 + $0x180]]
    %s113 = sld [smem:[#allocation7 + $0x181]]
    %s114 = sld [smem:[#allocation7 + $0x182]]
    %s115 = sld [smem:[#allocation7 + $0x183]]
    %s116 = sld [smem:[#allocation7 + $0x200]]
    %s117 = sld [smem:[#allocation7 + $0x201]]
    %s118 = sld [smem:[#allocation7 + $0x202]]
    %s119 = sld [smem:[#allocation7 + $0x203]]
    %s120 = sld [smem:[#allocation7 + $0x280]]
    %s121 = sld [smem:[#allocation7 + $0x281]]
    %s122 = sld [smem:[#allocation7 + $0x282]]
    %s123 = sld [smem:[#allocation7 + $0x283]]
    %s124 = sld [smem:[#allocation7 + $0x300]]
    %s125 = sld [smem:[#allocation7 + $0x301]]
    %s126 = sld [smem:[#allocation7 + $0x302]]
    %s127 = sld [smem:[#allocation7 + $0x303]]
    %s128 = sld [smem:[#allocation7 + $0x380]]
    %s129 = sld [smem:[#allocation7 + $0x381]]
    %s130 = sld [smem:[#allocation7 + $0x382]]
    %s131 = sld [smem:[#allocation7 + $0x383]]
    %s132 = sld [smem:[#allocation8]]
    %s133 = sld [smem:[#allocation8 + $0x1]]
    %s134 = sld [smem:[#allocation8 + $0x2]]
    %s135 = sld [smem:[#allocation8 + $0x3]]
    %v136 = vstv %s76
    %v137 = vmul.f32 %v74, %v136
    %v138 = vstv %s84
    %v139 = vmul.f32 %v75, %v138
    %v140 = vadd.f32 %v137, %v139
    %v141 = vstv %s92
    %v142 = vadd.f32 %v140, %v141
    %v143 = vmax.f32 %v142, 0.0
    %v144 = vstv %s100
    %v145 = vmul.f32 %v143, %v144
    %v146 = vstv %s101
    %v147 = vmul.f32 %v143, %v146
    %v148 = vstv %s102
    %v149 = vmul.f32 %v143, %v148
    %v150 = vstv %s103
    %v151 = vmul.f32 %v143, %v150
    %v152 = vstv %s77
    %v153 = vmul.f32 %v74, %v152
    %v154 = vstv %s85
    %v155 = vmul.f32 %v75, %v154
    %v156 = vadd.f32 %v153, %v155
    %v157 = vstv %s93
    %v158 = vadd.f32 %v156, %v157
    %v159 = vmax.f32 %v158, 0.0
    %v160 = vstv %s104
    %v161 = vmul.f32 %v159, %v160
    %v162 = vadd.f32 %v145, %v161
    %v163 = vstv %s105
    %v164 = vmul.f32 %v159, %v163
    %v165 = vadd.f32 %v147, %v164
    %v166 = vstv %s106
    %v167 = vmul.f32 %v159, %v166
    %v168 = vadd.f32 %v149, %v167
    %v169 = vstv %s107
    %v170 = vmul.f32 %v159, %v169
    %v171 = vadd.f32 %v151, %v170
    %v172 = vstv %s78
    %v173 = vmul.f32 %v74, %v172
    %v174 = vstv %s86
    %v175 = vmul.f32 %v75, %v174
    %v176 = vadd.f32 %v173, %v175
    %v177 = vstv %s94
    %v178 = vadd.f32 %v176, %v177
    %v179 = vmax.f32 %v178, 0.0
    %v180 = vstv %s108
    %v181 = vmul.f32 %v179, %v180
    %v182 = vadd.f32 %v162, %v181
    %v183 = vstv %s109
    %v184 = vmul.f32 %v179, %v183
    %v185 = vadd.f32 %v165, %v184
    %v186 = vstv %s110
    %v187 = vmul.f32 %v179, %v186
    %v188 = vadd.f32 %v168, %v187
    %v189 = vstv %s111
    %v190 = vmul.f32 %v179, %v189
    %v191 = vadd.f32 %v171, %v190
    %v192 = vstv %s79
    %v193 = vmul.f32 %v74, %v192
    %v194 = vstv %s87
    %v195 = vmul.f32 %v75, %v194
    %v196 = vadd.f32 %v193, %v195
    %v197 = vstv %s95
    %v198 = vadd.f32 %v196, %v197
    %v199 = vmax.f32 %v198, 0.0
    %v200 = vstv %s112
    %v201 = vmul.f32 %v199, %v200
    %v202 = vadd.f32 %v182, %v201
    %v203 = vstv %s113
    %v204 = vmul.f32 %v199, %v203
    %v205 = vadd.f32 %v185, %v204
    %v206 = vstv %s114
    %v207 = vmul.f32 %v199, %v206
    %v208 = vadd.f32 %v188, %v207
    %v209 = vstv %s115
    %v210 = vmul.f32 %v199, %v209
    %v211 = vadd.f32 %v191, %v210
    %v212 = vstv %s80
    %v213 = vmul.f32 %v74, %v212
    %v214 = vstv %s88
    %v215 = vmul.f32 %v75, %v214
    %v216 = vadd.f32 %v213, %v215
    %v217 = vstv %s96
    %v218 = vadd.f32 %v216, %v217
    %v219 = vmax.f32 %v218, 0.0
    %v220 = vstv %s116
    %v221 = vmul.f32 %v219, %v220
    %v222 = vadd.f32 %v202, %v221
    %v223 = vstv %s117
    %v224 = vmul.f32 %v219, %v223
    %v225 = vadd.f32 %v205, %v224
    %v226 = vstv %s118
    %v227 = vmul.f32 %v219, %v226
    %v228 = vadd.f32 %v208, %v227
    %v229 = vstv %s119
    %v230 = vmul.f32 %v219, %v229
    %v231 = vadd.f32 %v211, %v230
    %v232 = vstv %s81
    %v233 = vmul.f32 %v74, %v232
    %v234 = vstv %s89
    %v235 = vmul.f32 %v75, %v234
    %v236 = vadd.f32 %v233, %v235
    %v237 = vstv %s97
    %v238 = vadd.f32 %v236, %v237
    %v239 = vmax.f32 %v238, 0.0
    %v240 = vstv %s120
    %v241 = vmul.f32 %v239, %v240
    %v242 = vadd.f32 %v222, %v241
    %v243 = vstv %s121
    %v244 = vmul.f32 %v239, %v243
    %v245 = vadd.f32 %v225, %v244
    %v246 = vstv %s122
    %v247 = vmul.f32 %v239, %v246
    %v248 = vadd.f32 %v228, %v247
    %v249 = vstv %s123
    %v250 = vmul.f32 %v239, %v249
    %v251 = vadd.f32 %v231, %v250
    %v252 = vstv %s82
    %v253 = vmul.f32 %v74, %v252
    %v254 = vstv %s90
    %v255 = vmul.f32 %v75, %v254
    %v256 = vadd.f32 %v253, %v255
    %v257 = vstv %s98
    %v258 = vadd.f32 %v256, %v257
    %v259 = vmax.f32 %v258, 0.0
    %v260 = vstv %s124
    %v261 = vmul.f32 %v259, %v260
    %v262 = vadd.f32 %v242, %v261
    %v263 = vstv %s125
    %v264 = vmul.f32 %v259, %v263
    %v265 = vadd.f32 %v245, %v264
    %v266 = vstv %s126
    %v267 = vmul.f32 %v259, %v266
    %v268 = vadd.f32 %v248, %v267
    %v269 = vstv %s127
    %v270 = vmul.f32 %v259, %v269
    %v271 = vadd.f32 %v251, %v270
    %v272 = vstv %s83
    %v273 = vmul.f32 %v74, %v272
    %v274 = vstv %s91
    %v275 = vmul.f32 %v75, %v274
    %v276 = vadd.f32 %v273, %v275
    %v277 = vstv %s99
    %v278 = vadd.f32 %v276, %v277
    %v279 = vmax.f32 %v278, 0.0
    %v280 = vstv %s128
    %v281 = vmul.f32 %v279, %v280
    %v282 = vadd.f32 %v262, %v281
    %v283 = vstv %s129
    %v284 = vmul.f32 %v279, %v283
    %v285 = vadd.f32 %v265, %v284
    %v286 = vstv %s130
    %v287 = vmul.f32 %v279, %v286
    %v288 = vadd.f32 %v268, %v287
    %v289 = vstv %s131
    %v290 = vmul.f32 %v279, %v289
    %v291 = vadd.f32 %v271, %v290
    %v292 = vstv %s132
    %v293 = vadd.f32 %v282, %v292
    %v294 = vmax.f32 %v293, 0.0
    %v295 = vsel %vm72, 0.0, %v294
    %296 = vst [vmem:[#allocation10] sm:$0x3] %v295
    %v297 = vstv %s133
    %v298 = vadd.f32 %v285, %v297
    %v299 = vmax.f32 %v298, 0.0
    %v300 = vsel %vm72, 0.0, %v299
    %s301 = scalar_lea.vmem [#allocation10], 2
    %302 = vst [vmem:[%s301] sm:$0x3] %v300
    %v303 = vstv %s134
    %v304 = vadd.f32 %v288, %v303
    %v305 = vmax.f32 %v304, 0.0
    %v306 = vsel %vm72, 0.0, %v305
    %s307 = scalar_lea.vmem [#allocation10], 4
    %308 = vst [vmem:[%s307] sm:$0x3] %v306
    %v309 = vstv %s135
    %v310 = vadd.f32 %v291, %v309
    %v311 = vmax.f32 %v310, 0.0
    %v312 = vsel %vm72, 0.0, %v311
    %s313 = scalar_lea.vmem [#allocation10], 6
    %314 = vst [vmem:[%s313] sm:$0x3] %v312
    // Predicated region
    $region38: #{tpu_custom_call.1} parent=1 // pred_check
      _
    $region39: #{tpu_custom_call.1} parent=1 // pred_check_branch
      %316 = sbr.rel (0) target = $region41
    $region40: #{tpu_custom_call.1} parent=1 // pred_region
      %s318 = ssub.s32 128, 128
      %319 = vsyncadd [#allocation3], %s318
      %s320 = sshll.u32 [#allocation10], 4
      %s321 = int_to_ptr.vmem [resolvable:$true] %s320
      %326 = dma.vmem_to_hbm [thread:$0]  %s321, 128, %s5, [#allocation3], 32, 32, 2
    $region41: #{tpu_custom_call.1} parent=1 // pred_fallthru
      _
    // Predicated region
    $region42: #{tpu_custom_call.1} parent=1 // pred_check
      _
    $region43: #{tpu_custom_call.1} parent=1 // pred_check_branch
      %328 = sbr.rel (0) target = $region45
    $region44: #{tpu_custom_call.1} parent=1 // pred_region
      %329 = dma.done [#allocation3], 128
    $region45: #{tpu_custom_call.1} parent=1 // pred_fallthru
      _
    %330 = vsyncpa [#allocation3], 1
    %331 = vsyncpa [#allocation4], 1
    %332 = vsyncpa [#allocation6], 1
    %333 = vsyncpa [#allocation9], 1

</llo_original>
